<compile_context>
chip_gen: v5e
topology: v5e:2x2
jax: 0.10.0
libtpu: 0.0.40
codegen_flags: <defaults>
</compile_context>

<pallas_src>
import functools

import jax
import jax.numpy as jnp
from jax.experimental import pallas as pl
from jax.experimental.pallas import tpu as pltpu


def _soft_ce_kernel(pred_ref, target_ref, out_ref, *, total_rows):
    i = pl.program_id(0)

    pred = pred_ref[...].astype(jnp.float32)
    tgt = target_ref[...].astype(jnp.float32)
    tile_b = pred.shape[0]

    # Numerically stable pieces of log_softmax(pred) / softmax(target).
    p_shift = pred - jnp.max(pred, axis=-1, keepdims=True)
    lse = jnp.log(jnp.sum(jnp.exp(p_shift), axis=-1, keepdims=True))

    t_exp = jnp.exp(tgt - jnp.max(tgt, axis=-1, keepdims=True))
    t_sum = jnp.sum(t_exp, axis=-1, keepdims=True)

    # sum_j (lse - p_shift_j) * t_exp_j / t_sum  ==  lse - <p_shift, t_exp>/t_sum
    weighted = jnp.sum(p_shift * t_exp, axis=-1, keepdims=True)
    # Exact reciprocal (approx=True vrcp is too coarse for the 1e-5 check).
    row_loss = lse - weighted * pl.reciprocal(t_sum)                 # (tile_b, 1)

    # Mask padded rows of a ragged last block with a select (NOT a
    # multiplicative mask: NaN * 0 would still propagate).
    rows = i * tile_b + jax.lax.broadcasted_iota(jnp.int32, (tile_b, 1), 0)
    out_ref[...] = jnp.where(rows < total_rows, row_loss, 0.0)


def _round_up(x, m):
    return -(-x // m) * m


def _pick_tiling(B, N, pred_itemsize, tgt_itemsize):
    """Generation-aware batch-tile size + scoped-VMEM limit."""
    try:
        vmem_cap = int(pltpu.get_tpu_info().vmem_capacity_bytes)
    except Exception:  # conservative fallback: v7x-sized VMEM (smallest gen)
        vmem_cap = 64 * 1024 * 1024

    pair_bytes = pred_itemsize + tgt_itemsize
    min_item = min(pred_itemsize, tgt_itemsize)
    max_item = max(pred_itemsize, tgt_itemsize)

    # dtype-native sublane multiple: 8 for 4-byte, 16 for bf16, 32 for int8/fp8
    # (avoids a relayout/repack of narrow-dtype blocks before the f32 upcast).
    sub_mult = max(8, 32 // min_item)

    # Per-row VMEM cost: double-buffered input streams + ~6 live f32
    # elementwise temporaries (pred_f32, tgt_f32, p_shift, exp(p_shift),
    # t_exp, p_shift*t_exp) that Mosaic materializes in VMEM.
    per_row = 2 * N * pair_bytes + 6 * N * 4
    budget = int(vmem_cap * 0.6)

    if per_row * sub_mult > budget:
        # TODO(synk): add a class-dim grid axis with flash-style online
        # max/sum-exp for very wide N instead of failing.
        raise NotImplementedError(
            f"class dim N={N} too wide for a single VMEM block on this chip "
            f"(needs {per_row * sub_mult} bytes, budget {budget})")

    # Largest tile that fits the budget ...
    tile_b = budget // per_row
    # ... capped by bytes, not rows: multi-MiB per-input blocks already sit at
    # ~85-86% of the HBM roofline; no benefit past ~16 MiB per input block.
    max_rows_by_bytes = max(sub_mult, (16 << 20) // (N * max_item))
    tile_b = min(tile_b, max_rows_by_bytes)
    # Round to the native sublane multiple and don't exceed the (padded) batch.
    tile_b = max(sub_mult, tile_b // sub_mult * sub_mult)
    tile_b = min(tile_b, _round_up(B, sub_mult))

    n_blocks = -(-B // tile_b)

    # Scoped-VMEM limit: inputs (double-buffered) + f32 temps + output + margin.
    vmem_need = tile_b * per_row + 4 * tile_b * 4 + (2 << 20)
    vmem_limit = int(min(max(vmem_need, 32 << 20), int(vmem_cap * 0.9)))
    return tile_b, n_blocks, vmem_limit


def soft_ce_loss(pred, target, weight=None, loss_weight=1.0, reduction="mean",
                 max_rows_per_block=None):
    """Pallas implementation of Soft_Ce_Loss.forward."""
    assert pred.shape == target.shape and pred.ndim == 2
    if reduction not in ("none", "mean", "sum"):
        raise ValueError(f"Unsupported reduction mode: {reduction}")

    B, N = pred.shape
    pair_bytes = pred.dtype.itemsize + target.dtype.itemsize
    tile_b, n_blocks, vmem_limit = _pick_tiling(
        B, N, pred.dtype.itemsize, target.dtype.itemsize)
    if max_rows_per_block is not None:  # testing hook: force multi-block grids
        tile_b = min(tile_b, max(8, max_rows_per_block // 8 * 8))
        n_blocks = -(-B // tile_b)

    kernel = functools.partial(_soft_ce_kernel, total_rows=B)

    row_losses = pl.pallas_call(
        kernel,
        out_shape=jax.ShapeDtypeStruct((n_blocks * tile_b, 1), jnp.float32),
        grid_spec=pltpu.PrefetchScalarGridSpec(
            num_scalar_prefetch=0,
            grid=(n_blocks,),
            in_specs=[
                pl.BlockSpec((tile_b, N), lambda i: (i, 0)),
                pl.BlockSpec((tile_b, N), lambda i: (i, 0)),
            ],
            out_specs=pl.BlockSpec((tile_b, 1), lambda i: (i, 0)),
        ),
        compiler_params=pltpu.CompilerParams(
            dimension_semantics=("parallel",),
            vmem_limit_bytes=vmem_limit,
        ),
        cost_estimate=pl.CostEstimate(
            flops=10 * B * N,
            transcendentals=2 * B * N,
            bytes_accessed=B * N * pair_bytes + 4 * n_blocks * tile_b,
        ),
    )(pred, target)

    row_losses = row_losses[:B, 0]                       # (B,), padded rows dropped

    if reduction == "mean":
        loss = jnp.sum(row_losses) / B
    else:
        # The reference module returns the per-row vector for both 'none' and
        # 'sum' (it only reduces over the class dim in that branch).
        loss = row_losses

    if weight is not None:
        w = jnp.reshape(weight, (-1,)).astype(jnp.float32)
        loss = jnp.sum(loss * w) / jnp.sum(w)

    return loss * loss_weight


def _soft_ce_loss_ref(pred, target, loss_weight=1.0, reduction="mean"):
    nll = -jax.nn.log_softmax(pred.astype(jnp.float32), axis=-1)
    tsm = jax.nn.softmax(target.astype(jnp.float32), axis=-1)
    if reduction == "mean":
        return jnp.sum(nll * tsm) / pred.shape[0] * loss_weight
    return jnp.sum(nll * tsm, axis=-1) * loss_weight


if __name__ == "__main__":
    key = jax.random.PRNGKey(0)
    k1, k2, k3, k4 = jax.random.split(key, 4)

    # Case 1: f32, aligned shapes, single block.
    B, N = 16, 128
    pred = jax.random.normal(k1, (B, N), dtype=jnp.float32)
    target = jax.random.normal(k2, (B, N), dtype=jnp.float32)
    loss = jax.block_until_ready(soft_ce_loss(pred, target))
    ref = _soft_ce_loss_ref(pred, target)
    assert jnp.allclose(loss, ref, rtol=1e-5, atol=1e-5), (loss, ref)

    # Case 2: bf16 inputs + ragged batch (tail-row mask, half HBM traffic,
    # bf16 sublane multiple of 16).
    B2, N2 = 10, 160
    pred2 = jax.random.normal(k3, (B2, N2), dtype=jnp.bfloat16)
    target2 = jax.random.normal(k4, (B2, N2), dtype=jnp.bfloat16)
    loss2 = jax.block_until_ready(soft_ce_loss(pred2, target2, loss_weight=0.5))
    ref2 = _soft_ce_loss_ref(pred2, target2, loss_weight=0.5)
    assert jnp.allclose(loss2, ref2, rtol=1e-5, atol=1e-5), (loss2, ref2)

    # Case 3: force a multi-block "parallel" grid (3 blocks of 8 rows) to
    # exercise per-block output writes + the outside sum.
    B3, N3 = 24, 128
    pred3 = jax.random.normal(k1, (B3, N3), dtype=jnp.float32)
    target3 = jax.random.normal(k2, (B3, N3), dtype=jnp.float32)
    loss3 = jax.block_until_ready(soft_ce_loss(pred3, target3, max_rows_per_block=8))
    ref3 = _soft_ce_loss_ref(pred3, target3)
    assert jnp.allclose(loss3, ref3, rtol=1e-5, atol=1e-5), (loss3, ref3)

    # Case 4: reduction='none' (per-row vector, as the reference module does).
    loss4 = jax.block_until_ready(soft_ce_loss(pred, target, reduction="none"))
    ref4 = _soft_ce_loss_ref(pred, target, reduction="none")
    assert jnp.allclose(loss4, ref4, rtol=1e-5, atol=1e-5), (loss4, ref4)

    print("KERNEL_OK")
</pallas_src>

<mosaic_0001>
module attributes {stable_mosaic.version = 11 : i64} {
  func.func @_soft_ce_kernel(%arg0: i32, %arg1: memref<16x128xf32, #tpu.memory_space<vmem>>, %arg2: memref<16x128xf32, #tpu.memory_space<vmem>>, %arg3: memref<16x1xf32, #tpu.memory_space<vmem>>) attributes {dimension_semantics = [#tpu.dimension_semantics<parallel>], iteration_bounds = array<i64: 1>, scalar_prefetch = 0 : i64, scratch_operands = 0 : i64, tpu.core_type = #tpu.core_type<tc>, window_params = [{transform_indices = @transform_0, window_bounds = array<i64: 16, 128>}, {transform_indices = @transform_1, window_bounds = array<i64: 16, 128>}, {transform_indices = @transform_2, window_bounds = array<i64: 16, 1>}]} {
    %c0 = arith.constant 0 : index
    %c0_0 = arith.constant 0 : index
    %0 = vector.load %arg1[%c0, %c0_0] : memref<16x128xf32, #tpu.memory_space<vmem>>, vector<16x128xf32>
    %c0_1 = arith.constant 0 : index
    %c0_2 = arith.constant 0 : index
    %1 = vector.load %arg2[%c0_1, %c0_2] : memref<16x128xf32, #tpu.memory_space<vmem>>, vector<16x128xf32>
    %cst = arith.constant dense<0xFF800000> : vector<16xf32>
    %2 = vector.multi_reduction <maximumf>, %0, %cst [1] : vector<16x128xf32> to vector<16xf32>
    %3 = vector.shape_cast %2 : vector<16xf32> to vector<16x1xf32>
    %4 = vector.broadcast %3 : vector<16x1xf32> to vector<16x128xf32>
    %5 = arith.subf %0, %4 : vector<16x128xf32>
    %6 = math.exp %5 : vector<16x128xf32>
    %cst_3 = arith.constant dense<0.000000e+00> : vector<16xf32>
    %7 = vector.multi_reduction <add>, %6, %cst_3 [1] : vector<16x128xf32> to vector<16xf32>
    %8 = vector.shape_cast %7 : vector<16xf32> to vector<16x1xf32>
    %9 = math.log %8 : vector<16x1xf32>
    %cst_4 = arith.constant dense<0xFF800000> : vector<16xf32>
    %10 = vector.multi_reduction <maximumf>, %1, %cst_4 [1] : vector<16x128xf32> to vector<16xf32>
    %11 = vector.shape_cast %10 : vector<16xf32> to vector<16x1xf32>
    %12 = vector.broadcast %11 : vector<16x1xf32> to vector<16x128xf32>
    %13 = arith.subf %1, %12 : vector<16x128xf32>
    %14 = math.exp %13 : vector<16x128xf32>
    %cst_5 = arith.constant dense<0.000000e+00> : vector<16xf32>
    %15 = vector.multi_reduction <add>, %14, %cst_5 [1] : vector<16x128xf32> to vector<16xf32>
    %16 = vector.shape_cast %15 : vector<16xf32> to vector<16x1xf32>
    %17 = arith.mulf %5, %14 : vector<16x128xf32>
    %cst_6 = arith.constant dense<0.000000e+00> : vector<16xf32>
    %18 = vector.multi_reduction <add>, %17, %cst_6 [1] : vector<16x128xf32> to vector<16xf32>
    %19 = vector.shape_cast %18 : vector<16xf32> to vector<16x1xf32>
    %20 = tpu.reciprocal %16 : vector<16x1xf32> -> vector<16x1xf32>
    %21 = arith.mulf %19, %20 : vector<16x1xf32>
    %22 = arith.subf %9, %21 : vector<16x1xf32>
    %c16_i32 = arith.constant 16 : i32
    %23 = arith.muli %arg0, %c16_i32 : i32
    %24 = tpu.iota {dimensions = array<i32: 0>} : vector<16x1xi32>
    %25 = vector.broadcast %23 : i32 to vector<16x1xi32>
    %26 = arith.addi %25, %24 : vector<16x1xi32>
    %c16_i32_7 = arith.constant 16 : i32
    %27 = vector.broadcast %c16_i32_7 : i32 to vector<16x1xi32>
    %28 = arith.cmpi slt, %26, %27 : vector<16x1xi32>
    %cst_8 = arith.constant 0.000000e+00 : f32
    %29 = vector.broadcast %cst_8 : f32 to vector<16x1xf32>
    %30 = arith.select %28, %22, %29 : vector<16x1xi1>, vector<16x1xf32>
    %c0_9 = arith.constant 0 : index
    %c0_10 = arith.constant 0 : index
    %31 = vector.load %arg3[%c0_9, %c0_10] : memref<16x1xf32, #tpu.memory_space<vmem>>, vector<16x1xf32>
    tpu.vector_store %arg3[%c0_9, %c0_10], %30 {strides = array<i32>} : memref<16x1xf32, #tpu.memory_space<vmem>>, vector<16x1xf32>,
    return
  }
  func.func @transform_0(%arg0: i32) -> (i32, i32) {
    %c0_i32 = arith.constant 0 : i32
    %c0_i32_0 = arith.constant 0 : i32
    return %arg0, %c0_i32 : i32, i32
  }
  func.func @transform_1(%arg0: i32) -> (i32, i32) {
    %c0_i32 = arith.constant 0 : i32
    %c0_i32_0 = arith.constant 0 : i32
    return %arg0, %c0_i32 : i32, i32
  }
  func.func @transform_2(%arg0: i32) -> (i32, i32) {
    %c0_i32 = arith.constant 0 : i32
    %c0_i32_0 = arith.constant 0 : i32
    return %arg0, %c0_i32 : i32, i32
  }
}

</mosaic_0001>

<llo_original>
// kernel: tpu_custom_call.1
$region0: #{tpu_custom_call.1}
  #allocation0 [shape = 'u32[]', space=smem, size = 0x4, offset = 0x4, fixed_abs, tag = 'smem constant byte address 0x4 - core index']
  #allocation1 [shape = 'u32[72,128]{1,0:T(1,128)}', space=vmem, size = 0x9000, scoped, tag = 'internal scratch']
  %s0 = inlined_call_operand.hbm [shape: f32[16,128], index: 0, kind: input, shape index: {}]
  %s1 = inlined_call_operand.hbm [shape: f32[16,128], index: 1, kind: input, shape index: {}]
  %s2 = inlined_call_operand.vmem [shape: f32[16,1], index: 2, kind: output, shape index: {}]
  %s3 = sld [smem:[#allocation0]]
  $region26: #{tpu_custom_call.1} parent=0
    _
  %s5 = ssub.s32 1, %s3
  %s6 = scalar_select 0, %s5, %s3
  $region1: #{tpu_custom_call.1} parent=0
    #allocation2 [shape = 'u8[8192]{0}', space=vmem, size = 0x2000, scoped, tag = 'input window, operand 0, single buffered']
    #allocation3 [shape = 's32[1]{0}', space=sflag, size = 0x4, scoped, tag = 'scoped memory for tpu_custom_call.1']
    #allocation4 [shape = 'u8[8192]{0}', space=vmem, size = 0x2000, scoped, tag = 'input window, operand 1, single buffered']
    #allocation5 [shape = 's32[1]{0}', space=sflag, size = 0x4, scoped, tag = 'scoped memory for tpu_custom_call.1']
    %7 = vsyncpa [#allocation3], 0
    %8 = vsyncpa [#allocation5], 0
    // Predicated region
    $region2: #{tpu_custom_call.1} parent=1 // pred_check
      _
    $region3: #{tpu_custom_call.1} parent=1 // pred_check_branch
      %10 = sbr.rel (0) target = $region5
    $region4: #{tpu_custom_call.1} parent=1 // pred_region
      %12 = vsyncadd [#allocation3], 0
      %s13 = sshll.u32 %s0, 4
      %s14 = int_to_ptr.hbm [resolvable:$true] %s13
      %s15 = sshll.u32 [#allocation2], 4
      %s16 = int_to_ptr.vmem [resolvable:$true] %s15
      %21 = dma.hbm_to_vmem [thread:$0]  %s14, 256, %s16, [#allocation3], 128, 128, 8
    $region5: #{tpu_custom_call.1} parent=1 // pred_fallthru
      _
    // Predicated region
    $region6: #{tpu_custom_call.1} parent=1 // pred_check
      _
    $region7: #{tpu_custom_call.1} parent=1 // pred_check_branch
      %23 = sbr.rel (0) target = $region9
    $region8: #{tpu_custom_call.1} parent=1 // pred_region
      %25 = vsyncadd [#allocation5], 0
      %s26 = sshll.u32 %s1, 4
      %s27 = int_to_ptr.hbm [resolvable:$true] %s26
      %s28 = sshll.u32 [#allocation4], 4
      %s29 = int_to_ptr.vmem [resolvable:$true] %s28
      %34 = dma.hbm_to_vmem [thread:$0]  %s27, 256, %s29, [#allocation5], 128, 128, 8
    $region9: #{tpu_custom_call.1} parent=1 // pred_fallthru
      _
    // Predicated region
    $region10: #{tpu_custom_call.1} parent=1 // pred_check
      _
    $region11: #{tpu_custom_call.1} parent=1 // pred_check_branch
      %36 = sbr.rel (0) target = $region13
    $region12: #{tpu_custom_call.1} parent=1 // pred_region
      %38 = dma.done [#allocation3], 256
    $region13: #{tpu_custom_call.1} parent=1 // pred_fallthru
      _
    // Predicated region
    $region14: #{tpu_custom_call.1} parent=1 // pred_check
      _
    $region15: #{tpu_custom_call.1} parent=1 // pred_check_branch
      %40 = sbr.rel (0) target = $region17
    $region16: #{tpu_custom_call.1} parent=1 // pred_region
      %42 = dma.done [#allocation5], 256
    $region17: #{tpu_custom_call.1} parent=1 // pred_fallthru
      _
    %v43 = vld [vmem:[#allocation2] sm:$0xff]
    %v44 = vld [vmem:[#allocation2 + $0x8] sm:$0xff]
    %v45 = vld [vmem:[#allocation4] sm:$0xff]
    %v46 = vld [vmem:[#allocation4 + $0x8] sm:$0xff]
    %47 = vmax.xlane.f32.xlu0 %v43
    %v48 = vpop.xlane.xlu0 %47
    %49 = vmax.xlane.f32.xlu0 %v44
    %v50 = vpop.xlane.xlu0 %49
    %v51 = vsub.f32 %v43, %v48
    %v52 = vsub.f32 %v44, %v50
    %v53 = vmul.f32 %v51, 1.442695
    %v54 = vpow.pop %v53
    %v55 = vmul.f32 %v52, 1.442695
    %v56 = vpow.pop %v55
    %57 = vadd.xlane.f32.xlu0 %v54
    %v58 = vpop.xlane.xlu0 %57
    %59 = vadd.xlane.f32.xlu0 %v56
    %v60 = vpop.xlane.xlu0 %59
    %v61 = vlog2.pop %v58
    %v62 = vmul.f32 %v61, 0.6931472
    %v63 = vlog2.pop %v60
    %v64 = vmul.f32 %v63, 0.6931472
    %65 = vmax.xlane.f32.xlu0 %v45
    %v66 = vpop.xlane.xlu0 %65
    %67 = vmax.xlane.f32.xlu0 %v46
    %v68 = vpop.xlane.xlu0 %67
    %v69 = vsub.f32 %v45, %v66
    %v70 = vsub.f32 %v46, %v68
    %v71 = vmul.f32 %v69, 1.442695
    %v72 = vpow.pop %v71
    %v73 = vmul.f32 %v70, 1.442695
    %v74 = vpow.pop %v73
    %75 = vadd.xlane.f32.xlu0 %v72
    %v76 = vpop.xlane.xlu0 %75
    %77 = vadd.xlane.f32.xlu0 %v74
    %v78 = vpop.xlane.xlu0 %77
    %v79 = vmul.f32 %v51, %v72
    %v80 = vmul.f32 %v52, %v74
    %81 = vadd.xlane.f32.xlu0 %v79
    %v82 = vpop.xlane.xlu0 %81
    %83 = vadd.xlane.f32.xlu0 %v80
    %v84 = vpop.xlane.xlu0 %83
    %v85 = vrcp.pop %v76
    %v86 = vmul.f32 %v76, %v85
    %v87 = vsub.f32 1.0, %v86
    %v88 = vmul.f32 %v85, %v87
    %v89 = vadd.f32 %v85, %v88
    %vm90 = vweird.f32 %v76
    %vm91 = vweird.f32 %v85
    %vm92 = vmor %vm90, %vm91
    %v93 = vsel %vm92, %v85, %v89
    %v94 = vand.u32 2147483647, %v76
    %vm95 = vcmp.eq.f32.partialorder %v94, 8.507059e+37
    %v96 = vand.u32 %v76, 2147483648
    %v97 = vor.u32 1.1754944e-38, %v96
    %v98 = vsel %vm95, %v97, %v93
    %v99 = vrcp.pop %v78
    %v100 = vmul.f32 %v78, %v99
    %v101 = vsub.f32 1.0, %v100
    %v102 = vmul.f32 %v99, %v101
    %v103 = vadd.f32 %v99, %v102
    %vm104 = vweird.f32 %v78
    %vm105 = vweird.f32 %v99
    %vm106 = vmor %vm104, %vm105
    %v107 = vsel %vm106, %v99, %v103
    %v108 = vand.u32 2147483647, %v78
    %vm109 = vcmp.eq.f32.partialorder %v108, 8.507059e+37
    %v110 = vand.u32 %v78, 2147483648
    %v111 = vor.u32 1.1754944e-38, %v110
    %v112 = vsel %vm109, %v111, %v107
    %v113 = vmul.f32 %v82, %v98
    %v114 = vmul.f32 %v84, %v112
    %v115 = vsub.f32 %v62, %v113
    %v116 = vsub.f32 %v64, %v114
    %s117 = smul.u32 0, 16
    %v118 = vlaneseq
    %v119 = vshrl.u32 %v118, 7
    %v120 = vadd.s32 %v119, 8
    %v121 = vstv %s117
    %v122 = vadd.s32 %v121, %v119
    %v123 = vadd.s32 %v121, %v120
    %vm124 = vcmp.lt.s32.totalorder %v122, 16
    %vm125 = vcmp.lt.s32.totalorder %v123, 16
    %v126 = vsel %vm124, %v115, 0.0
    %v127 = vsel %vm125, %v116, 0.0
    %vm128 = vcmask 7168
    %129 = vst.msk [vmem:[%s2] sm:$0xff] %vm128, %v126
    %130 = vst.msk [vmem:[%s2 + $0x8] sm:$0xff] %vm128, %v127
    // Predicated region
    $region18: #{tpu_custom_call.1} parent=1 // pred_check
      _
    $region19: #{tpu_custom_call.1} parent=1 // pred_check_branch
      %132 = sbr.rel (0) target = $region21
    $region20: #{tpu_custom_call.1} parent=1 // pred_region
      _
    $region21: #{tpu_custom_call.1} parent=1 // pred_fallthru
      _
    // Predicated region
    $region22: #{tpu_custom_call.1} parent=1 // pred_check
      _
    $region23: #{tpu_custom_call.1} parent=1 // pred_check_branch
      %134 = sbr.rel (0) target = $region25
    $region24: #{tpu_custom_call.1} parent=1 // pred_region
      _
    $region25: #{tpu_custom_call.1} parent=1 // pred_fallthru
      _
    %135 = vsyncpa [#allocation3], 1
    %136 = vsyncpa [#allocation5], 1

</llo_original>
